<compile_context>
chip_gen: v7x
topology: tpu7x:2x2x1
jax: 0.10.0
libtpu: 0.0.40
codegen_flags: <defaults>
</compile_context>

<pallas_src>
import numpy as np
import jax
import jax.numpy as jnp
from jax import lax
from jax.experimental import pallas as pl
from jax.experimental.pallas import tpu as pltpu


def sentgate_kernel(total_ref, se_ref, doc_s_ref, out_ref):
    """One grid step = one (batch element, doc_len tile).

    total_ref : SMEM (B,) int32       total valid word rows per batch element
    se_ref    : VMEM (1, 2, S) int32  row 0 = starts, row 1 = ends (one-past)
    doc_s_ref : VMEM (1, S, H)        sentence vectors for this batch element
    out_ref   : VMEM (1, Lb, H)       word-level scores for this doc_len tile
    """
    b = pl.program_id(0)
    lt = pl.program_id(1)
    S = doc_s_ref.shape[1]
    Lb = out_ref.shape[1]
    row0 = lt * Lb                       # first global word row of this tile
    n_words = total_ref[b]

    # Fast path: tile lies entirely past the last valid word row -> all zero.
    # Skips the compares / cast / MXU push; the step is pure output DMA.
    @pl.when(row0 >= n_words)
    def _():
        out_ref[...] = jnp.zeros_like(out_ref)

    @pl.when(row0 < n_words)
    def _():
        starts_v = se_ref[0, 0:1, :]     # (1, S) lane vectors straight from VMEM
        ends_v = se_ref[0, 1:2, :]
        # (Lb, S) 0/1 selection matrix: word row l belongs to sentence j iff
        # starts[j] <= l < ends[j].  Rows past the last valid word stay all
        # zero, matching the zero-initialized PyTorch output.
        word_pos = row0 + lax.broadcasted_iota(jnp.int32, (Lb, S), 0)
        onehot = ((word_pos >= starts_v) & (word_pos < ends_v)).astype(doc_s_ref.dtype)
        # Sentence -> word broadcast as a single MXU matmul; exact because the
        # one-hot is 0/1 and each output row has at most one non-zero term.
        out_ref[0] = jnp.dot(
            onehot, doc_s_ref[0], preferred_element_type=jnp.float32
        ).astype(out_ref.dtype)


def _pick_doc_len_tile(doc_len, row_bytes, batch):
    """row_bytes = padded feature width * output itemsize."""
    # ~4 MiB output blocks reach 85%+ of the HBM store roofline; smaller tiles
    # pay per-step overhead, bigger ones just burn VMEM.
    block_len = max(8, (4 << 20) // max(row_bytes, 1))
    # Keep both v7x TensorCores fed when the batch axis alone can't.
    if batch < 2 and doc_len >= 16:
        block_len = min(block_len, -(-doc_len // 2))
    block_len = min(block_len, doc_len)
    if block_len < doc_len:
        block_len = max(8, (block_len // 8) * 8)   # sublane-aligned tiles
    return block_len                                # == doc_len -> full-dim block


def sentgate(doc_s, doc_len, wns, hidden_dim):
    """Pallas implementation of SentGate.forward(doc_s, doc_len, wns)."""
    B, S, H = doc_s.shape
    assert H == 2 * hidden_dim, "doc_s feature dim must equal 2 * hidden_dim"
    out_dtype = doc_s.dtype
    out_itemsize = jnp.dtype(out_dtype).itemsize

    # Lane-dense output: pad the feature dim to a multiple of 128 (masked
    # partial stores are ~4.5x slower and this kernel is store-bandwidth bound).
    H_pad = ((H + 127) // 128) * 128
    doc_s_k = doc_s if H_pad == H else jnp.pad(
        doc_s, ((0, 0), (0, 0), (0, H_pad - H)))

    # Break-masked cumsum of wns -> per-sentence [start, end) word-row ranges.
    wns = jnp.asarray(wns, jnp.int32)
    valid = jnp.cumprod((wns > 0).astype(jnp.int32), axis=1)   # break @ first 0
    wn_eff = jnp.maximum(wns, 0) * valid
    ends = jnp.cumsum(wn_eff, axis=1)                          # (B, S)
    starts = ends - wn_eff                                     # (B, S)
    se = jnp.stack([starts, ends], axis=1)                     # (B, 2, S)
    totals = ends[:, -1]                                       # (B,) valid rows
    # TODO(synk): if sum(wns[i]) > doc_len the extra rows are silently clipped,
    # whereas the original PyTorch slice assignment would raise a shape error.

    block_len = _pick_doc_len_tile(doc_len, H_pad * out_itemsize, B)
    grid = (B, pl.cdiv(doc_len, block_len))

    # Explicit VMEM budget: double-buffered output block + f32 dot intermediate
    # + double-buffered doc_s block + small int temps, with 2x headroom, clamped
    # well under v7x's 64 MiB physical VMEM (and above v5e's 16 MiB default).
    step_bytes = (2 * block_len * H_pad * out_itemsize
                  + block_len * H_pad * 4
                  + 2 * S * H_pad * out_itemsize
                  + 4 * block_len * S
                  + 16 * S)
    vmem_limit = int(min(max(2 * step_bytes, 16 << 20), 48 << 20))

    grid_spec = pltpu.PrefetchScalarGridSpec(
        num_scalar_prefetch=1,                     # totals -> SMEM
        grid=grid,
        in_specs=[
            pl.BlockSpec((1, 2, S), lambda b, lt, total: (b, 0, 0)),
            pl.BlockSpec((1, S, H_pad), lambda b, lt, total: (b, 0, 0)),
        ],
        out_specs=pl.BlockSpec((1, block_len, H_pad),
                               lambda b, lt, total: (b, lt, 0)),
    )

    cost = pl.CostEstimate(
        flops=2 * B * doc_len * S * H_pad,                      # tiny one-hot matmul
        transcendentals=0,
        bytes_accessed=(B * doc_len * H_pad * out_itemsize      # output stream
                        + B * S * H_pad * out_itemsize          # doc_s
                        + B * (2 * S + 1) * 4),                 # se + totals
    )

    out = pl.pallas_call(
        sentgate_kernel,
        out_shape=jax.ShapeDtypeStruct((B, doc_len, H_pad), out_dtype),
        grid_spec=grid_spec,
        compiler_params=pltpu.CompilerParams(
            dimension_semantics=("parallel", "parallel"),
            vmem_limit_bytes=vmem_limit),
        cost_estimate=cost,
    )(totals, se, doc_s_k)

    return out if H_pad == H else out[..., :H]


def _ref_sentgate(doc_s_np, wns_np, doc_len, H):
    """Pure-numpy reference of the original PyTorch double loop."""
    Bn = doc_s_np.shape[0]
    out = np.zeros((Bn, doc_len, H), np.float32)
    for i in range(Bn):
        wn_prev = 0
        for j in range(wns_np.shape[1]):
            wn_next = int(wns_np[i, j])
            if wn_next == 0:
                break
            out[i, wn_prev:wn_prev + wn_next, :] = doc_s_np[i, j, :]
            wn_prev += wn_next
    return out


if __name__ == "__main__":
    # Config 1: batch=2, num_sent=8, hidden_dim=64 (H=128, lane-dense), doc_len=32.
    B, S, hidden_dim, doc_len = 2, 8, 64, 32
    H = 2 * hidden_dim
    doc_s = jax.random.normal(jax.random.PRNGKey(0), (B, S, H), dtype=jnp.float32)
    wns = jnp.array([[5, 3, 6, 4, 2, 1, 0, 7],
                     [4, 0, 7, 2, 1, 1, 1, 1]], dtype=jnp.int32)

    score = jax.block_until_ready(sentgate(doc_s, doc_len, wns, hidden_dim))
    ref = _ref_sentgate(np.asarray(doc_s), np.asarray(wns), doc_len, H)
    np.testing.assert_allclose(np.asarray(score), ref, rtol=1e-6, atol=1e-6)

    # Config 2: feature dim not a multiple of 128 (exercises the lane-padding
    # path) and a batch element that breaks at the first sentence (exercises
    # the all-zero fast path).
    hidden_dim2, doc_len2 = 48, 24        # H2 = 96 -> padded to 128 internally
    H2 = 2 * hidden_dim2
    doc_s2 = jax.random.normal(jax.random.PRNGKey(1), (B, S, H2), dtype=jnp.float32)
    wns2 = jnp.array([[0, 3, 2, 1, 1, 1, 1, 1],
                      [6, 6, 6, 6, 0, 1, 2, 3]], dtype=jnp.int32)
    score2 = jax.block_until_ready(sentgate(doc_s2, doc_len2, wns2, hidden_dim2))
    ref2 = _ref_sentgate(np.asarray(doc_s2), np.asarray(wns2), doc_len2, H2)
    np.testing.assert_allclose(np.asarray(score2), ref2, rtol=1e-6, atol=1e-6)

    print("KERNEL_OK")
</pallas_src>

<mosaic_0001>
module attributes {stable_mosaic.version = 11 : i64} {
  func.func @sentgate_kernel(%arg0: i32, %arg1: i32, %arg2: memref<2xi32, #tpu.memory_space<smem>>, %arg3: memref<1x2x8xi32, #tpu.memory_space<vmem>>, %arg4: memref<1x8x128xf32, #tpu.memory_space<vmem>>, %arg5: memref<1x32x128xf32, #tpu.memory_space<vmem>>) attributes {dimension_semantics = [#tpu.dimension_semantics<parallel>, #tpu.dimension_semantics<parallel>], iteration_bounds = array<i64: 2, 1>, scalar_prefetch = 1 : i64, scratch_operands = 0 : i64, tpu.core_type = #tpu.core_type<tc>, window_params = [{transform_indices = @transform_0, window_bounds = array<i64: 1, 2, 8>}, {transform_indices = @transform_1, window_bounds = array<i64: 1, 8, 128>}, {transform_indices = @transform_2, window_bounds = array<i64: 1, 32, 128>}]} {
    %c32_i32 = arith.constant 32 : i32
    %0 = arith.muli %arg1, %c32_i32 : i32
    %1 = arith.index_cast %arg0 : i32 to index
    %2 = memref.load %arg2[%1] : memref<2xi32, #tpu.memory_space<smem>>
    %3 = arith.cmpi sge, %0, %2 : i32
    %4 = arith.extui %3 : i1 to i32
    %c0_i32 = arith.constant 0 : i32
    %5 = arith.cmpi ne, %4, %c0_i32 : i32
    scf.if %5 {
      %cst = arith.constant 0.000000e+00 : f32
      %9 = vector.broadcast %cst : f32 to vector<1x32x128xf32>
      %c0 = arith.constant 0 : index
      %c0_1 = arith.constant 0 : index
      %c0_2 = arith.constant 0 : index
      %10 = vector.load %arg5[%c0, %c0_1, %c0_2] : memref<1x32x128xf32, #tpu.memory_space<vmem>>, vector<1x32x128xf32>
      tpu.vector_store %arg5[%c0, %c0_1, %c0_2], %9 {strides = array<i32>} : memref<1x32x128xf32, #tpu.memory_space<vmem>>, vector<1x32x128xf32>,
    } else {
    }
    %6 = arith.cmpi slt, %0, %2 : i32
    %7 = arith.extui %6 : i1 to i32
    %c0_i32_0 = arith.constant 0 : i32
    %8 = arith.cmpi ne, %7, %c0_i32_0 : i32
    scf.if %8 {
      %c0 = arith.constant 0 : index
      %c0_1 = arith.constant 0 : index
      %c0_2 = arith.constant 0 : index
      %9 = vector.load %arg3[%c0, %c0_1, %c0_2] : memref<1x2x8xi32, #tpu.memory_space<vmem>>, vector<1x1x8xi32>
      %10 = vector.shape_cast %9 : vector<1x1x8xi32> to vector<1x8xi32>
      %c0_3 = arith.constant 0 : index
      %c1 = arith.constant 1 : index
      %c0_4 = arith.constant 0 : index
      %11 = vector.load %arg3[%c0_3, %c1, %c0_4] : memref<1x2x8xi32, #tpu.memory_space<vmem>>, vector<1x1x8xi32>
      %12 = vector.shape_cast %11 : vector<1x1x8xi32> to vector<1x8xi32>
      %13 = tpu.iota {dimensions = array<i32: 0>} : vector<32x8xi32>
      %14 = vector.broadcast %0 : i32 to vector<32x8xi32>
      %15 = arith.addi %14, %13 : vector<32x8xi32>
      %16 = vector.broadcast %10 : vector<1x8xi32> to vector<32x8xi32>
      %17 = arith.cmpi sge, %15, %16 : vector<32x8xi32>
      %18 = vector.broadcast %12 : vector<1x8xi32> to vector<32x8xi32>
      %19 = arith.cmpi slt, %15, %18 : vector<32x8xi32>
      %20 = arith.andi %17, %19 : vector<32x8xi1>
      %21 = arith.extui %20 : vector<32x8xi1> to vector<32x8xi32>
      %22 = arith.sitofp %21 : vector<32x8xi32> to vector<32x8xf32>
      %c0_5 = arith.constant 0 : index
      %c0_6 = arith.constant 0 : index
      %c0_7 = arith.constant 0 : index
      %23 = vector.load %arg4[%c0_5, %c0_6, %c0_7] : memref<1x8x128xf32, #tpu.memory_space<vmem>>, vector<1x8x128xf32>
      %24 = vector.shape_cast %23 : vector<1x8x128xf32> to vector<8x128xf32>
      %cst = arith.constant dense<0.000000e+00> : vector<32x128xf32>
      %25 = tpu.matmul %22, %24, %cst {dimension_numbers = #tpu.dot_dimension_numbers<[1], [0], [0], [1], [0, 0, 1, 1], [], []>} : vector<32x8xf32>, vector<8x128xf32>, vector<32x128xf32> -> vector<32x128xf32>
      %c0_8 = arith.constant 0 : index
      %c0_9 = arith.constant 0 : index
      %c0_10 = arith.constant 0 : index
      %26 = vector.load %arg5[%c0_8, %c0_9, %c0_10] : memref<1x32x128xf32, #tpu.memory_space<vmem>>, vector<1x32x128xf32>
      %27 = vector.shape_cast %26 : vector<1x32x128xf32> to vector<32x128xf32>
      %28 = vector.shape_cast %25 : vector<32x128xf32> to vector<1x32x128xf32>
      tpu.vector_store %arg5[%c0_8, %c0_9, %c0_10], %28 {strides = array<i32>} : memref<1x32x128xf32, #tpu.memory_space<vmem>>, vector<1x32x128xf32>,
    } else {
    }
    return
  }
  func.func @transform_0(%arg0: i32, %arg1: i32, %arg2: memref<2xi32, #tpu.memory_space<smem>>) -> (i32, i32, i32) {
    %c0_i32 = arith.constant 0 : i32
    %c0_i32_0 = arith.constant 0 : i32
    %c0_i32_1 = arith.constant 0 : i32
    return %arg0, %c0_i32, %c0_i32_0 : i32, i32, i32
  }
  func.func @transform_1(%arg0: i32, %arg1: i32, %arg2: memref<2xi32, #tpu.memory_space<smem>>) -> (i32, i32, i32) {
    %c0_i32 = arith.constant 0 : i32
    %c0_i32_0 = arith.constant 0 : i32
    %c0_i32_1 = arith.constant 0 : i32
    return %arg0, %c0_i32, %c0_i32_0 : i32, i32, i32
  }
  func.func @transform_2(%arg0: i32, %arg1: i32, %arg2: memref<2xi32, #tpu.memory_space<smem>>) -> (i32, i32, i32) {
    %c0_i32 = arith.constant 0 : i32
    %c0_i32_0 = arith.constant 0 : i32
    return %arg0, %arg1, %c0_i32 : i32, i32, i32
  }
}

</mosaic_0001>

<llo_original>
// kernel: tpu_custom_call.1
$region0: #{tpu_custom_call.1}
  #allocation0 [shape = 'u32[]', space=smem, size = 0x4, offset = 0x4, fixed_abs, tag = 'smem constant byte address 0x4 - core index']
  #allocation1 [shape = 'u32[144,128]{1,0:T(1,128)}', space=vmem, size = 0x12000, scoped, tag = 'internal scratch']
  #allocation2 [shape = 's32[1]{0}', space=sflag, size = 0x4, scoped, tag = 'scoped memory for tpu_custom_call.1']
  #allocation3 [shape = 'u8[512]{0}', space=smem, size = 0x200, scoped, tag = 'prefetched SMEM operand 0']
  %s0 = inlined_call_operand.hbm [shape: s32[2], index: 0, kind: input, shape index: {}]
  %s1 = inlined_call_operand.hbm [shape: s32[2,2,8], index: 1, kind: input, shape index: {}]
  %s2 = inlined_call_operand.hbm [shape: f32[2,8,128], index: 2, kind: input, shape index: {}]
  %s3 = inlined_call_operand.hbm [shape: f32[2,32,128], index: 3, kind: output, shape index: {}]
  %s4 = sld [smem:[#allocation0]]
  $region57: #{tpu_custom_call.1} parent=0
    _
  %s6 = ssub.s32 1, %s4
  %s7 = scalar_select 0, %s6, %s4
  %9 = dma.hbm_to_smem %s0, 16, [#allocation3], [#allocation2]
  %10 = dma.done [#allocation2], 16
  %11 = sfence
  $region1: #{tpu_custom_call.1} parent=0
    #allocation4 [shape = 'u8[2048]{0}', space=vmem, size = 0x800, scoped, tag = 'input window, operand 1']
    #allocation5 [shape = 's32[2]{0}', space=sflag, size = 0x8, scoped, tag = 'scoped memory for tpu_custom_call.1']
    #allocation6 [shape = 's32[2]{0}', space=sflag, size = 0x8, scoped, tag = 'scoped memory for tpu_custom_call.1']
    #allocation7 [shape = 'u8[8192]{0}', space=vmem, size = 0x2000, scoped, tag = 'input window, operand 2']
    #allocation8 [shape = 's32[2]{0}', space=sflag, size = 0x8, scoped, tag = 'scoped memory for tpu_custom_call.1']
    #allocation9 [shape = 'u8[32768]{0}', space=vmem, size = 0x8000, scoped, tag = 'output window, operand 0']
    %12 = vsyncpa [#allocation5], 0
    %s13 = scalar_lea.sflag [#allocation5], 1
    %14 = vsyncpa %s13, 0
    %15 = vsyncpa [#allocation8], 0
    %s16 = scalar_lea.sflag [#allocation8], 1
    %17 = vsyncpa %s16, 0
    %18 = vsyncpa [#allocation6], 0
    %s19 = scalar_lea.sflag [#allocation6], 1
    %20 = vsyncpa %s19, 0
    loop: start=0, step=1, limit=4
    $region2: #{tpu_custom_call.1} parent=1 // loop_pre_header
      _
    $region3: #{tpu_custom_call.1} parent=1 // loop_header
      %s22 = sphi 0, %s26
      %p23 = scmp.ge.s32.totalorder %s22, 4
      %s29 = sphi 0, %s41
      %s30 = sphi 0, %s37
      %s31 = sphi 0, %s29
      %s32 = sphi 0, %s30
      %s33 = sphi 0, %s31
      %s34 = sphi 0, %s32
      %s44 = sphi 0, %s46
      %s47 = sphi 0, %s44
      %s48 = sphi 0, %s47
      %s64 = sphi 0, %s48
      %s70 = sphi 0, %s72
      %s73 = sphi 0, %s70
      %s74 = sphi 0, %s73
      %s90 = sphi 0, %s74
      %s98 = sphi 0, %s100
      %s101 = sphi 0, %s98
      %s102 = sphi 0, %s101
      %s118 = sphi 0, %s102
    $region4: #{tpu_custom_call.1} parent=1 // loop_header_branch
      %25 = sbr.rel (%p23) target = $region8
    $region5: #{tpu_custom_call.1} parent=1 // loop_body
      %s27 = ssub.s32 %s22, 1
      %s28 = ssub.s32 %s22, 2
      %s35 = sadd.s32 1, %s30
      %p36 = scmp.ge.s32.totalorder %s35, 1
      %s37 = scalar_select %p36, 0, %s35
      %s38 = sadd.s32 1, %s29
      %s39 = scalar_select %p36, %s38, %s29
      %p40 = scmp.ge.s32.totalorder %s39, 2
      %s41 = scalar_select %p40, 0, %s39
      %s42 = ssub.s32 %s29, %s41
      %p43 = scmp.eq.s32.totalorder %s42, 0
      %s45 = sadd.s32 %s44, 1
      %s46 = scalar_select %p43, %s44, %s45
      %p49 = pneg %p43
      %p50 = scmp.eq.s32.totalorder %s22, 1
      %p51 = por %p49, %p50
      %p52 = scmp.ne.s32.totalorder %s44, %s47
      %p53 = scmp.eq.s32.totalorder %s22, 0
      %p54 = por %p52, %p53
      %p55 = scmp.ne.s32.totalorder %s44, %s47
      %p56 = scmp.eq.s32.totalorder %s27, 1
      %p57 = por %p55, %p56
      %p58 = scmp.ne.s32.totalorder %s47, %s48
      %p59 = scmp.eq.s32.totalorder %s27, 0
      %p60 = por %p58, %p59
      %p61 = scmp.ne.s32.totalorder %s47, %s48
      %p62 = scmp.eq.s32.totalorder %s28, 1
      %p63 = por %p61, %p62
      %p65 = scmp.ne.s32.totalorder %s48, %s64
      %p66 = scmp.eq.s32.totalorder %s28, 0
      %p67 = por %p65, %p66
      %s68 = ssub.s32 %s29, %s41
      %p69 = scmp.eq.s32.totalorder %s68, 0
      %s71 = sadd.s32 %s70, 1
      %s72 = scalar_select %p69, %s70, %s71
      %p75 = pneg %p69
      %p76 = scmp.eq.s32.totalorder %s22, 1
      %p77 = por %p75, %p76
      %p78 = scmp.ne.s32.totalorder %s70, %s73
      %p79 = scmp.eq.s32.totalorder %s22, 0
      %p80 = por %p78, %p79
      %p81 = scmp.ne.s32.totalorder %s70, %s73
      %p82 = scmp.eq.s32.totalorder %s27, 1
      %p83 = por %p81, %p82
      %p84 = scmp.ne.s32.totalorder %s73, %s74
      %p85 = scmp.eq.s32.totalorder %s27, 0
      %p86 = por %p84, %p85
      %p87 = scmp.ne.s32.totalorder %s73, %s74
      %p88 = scmp.eq.s32.totalorder %s28, 1
      %p89 = por %p87, %p88
      %p91 = scmp.ne.s32.totalorder %s74, %s90
      %p92 = scmp.eq.s32.totalorder %s28, 0
      %p93 = por %p91, %p92
      %s94 = ssub.s32 %s29, %s41
      %s95 = ssub.s32 %s30, %s37
      %s96 = sor.u32 %s94, %s95
      %p97 = scmp.eq.s32.totalorder %s96, 0
      %s99 = sadd.s32 %s98, 1
      %s100 = scalar_select %p97, %s98, %s99
      %p103 = pneg %p97
      %p104 = scmp.eq.s32.totalorder %s22, 1
      %p105 = por %p103, %p104
      %p106 = scmp.ne.s32.totalorder %s98, %s101
      %p107 = scmp.eq.s32.totalorder %s22, 0
      %p108 = por %p106, %p107
      %p109 = scmp.ne.s32.totalorder %s98, %s101
      %p110 = scmp.eq.s32.totalorder %s27, 1
      %p111 = por %p109, %p110
      %p112 = scmp.ne.s32.totalorder %s101, %s102
      %p113 = scmp.eq.s32.totalorder %s27, 0
      %p114 = por %p112, %p113
      %p115 = scmp.ne.s32.totalorder %s101, %s102
      %p116 = scmp.eq.s32.totalorder %s28, 1
      %p117 = por %p115, %p116
      %p119 = scmp.ne.s32.totalorder %s102, %s118
      %p120 = scmp.eq.s32.totalorder %s28, 0
      %p121 = por %p119, %p120
      %p122 = scmp.le.s32.totalorder 1, %s22
      %p123 = scmp.lt.s32.totalorder %s22, 3
      %p124 = pnand %p122, %p123
      %p125 = pneg %p124
      // Predicated region
      $region9: #{tpu_custom_call.1} parent=5 // pred_check
        _
      $region10: #{tpu_custom_call.1} parent=5 // pred_check_branch
        %127 = sbr.rel (%p124) target = $region12
      $region11: #{tpu_custom_call.1} parent=5 // pred_region
        %s128 = ssub.s32 %s22, 1
      $region12: #{tpu_custom_call.1} parent=5 // pred_fallthru
        _
      %p129 = scmp.lt.s32.totalorder %s22, 2
      // Predicated region
      $region13: #{tpu_custom_call.1} parent=5 // pred_check
        %p130 = pneg %p129
      $region14: #{tpu_custom_call.1} parent=5 // pred_check_branch
        %132 = sbr.rel (%p130) target = $region16
      $region15: #{tpu_custom_call.1} parent=5 // pred_region
        // Predicated region
        $region17: #{tpu_custom_call.1} parent=15 // pred_check
          %p133 = pneg %p54
        $region18: #{tpu_custom_call.1} parent=15 // pred_check_branch
          %135 = sbr.rel (%p133) target = $region20
        $region19: #{tpu_custom_call.1} parent=15 // pred_region
          %s136 = sand.u32 %s44, 1
          %s137 = scalar_lea.sflag [#allocation5], %s136
          %s138 = sand.u32 %s44, 1
          %s139 = smul.addr %s138, 2
          %s140 = scalar_lea.vmem [#allocation4], %s139
          %s142 = ssub.s32 32, 32
          %143 = vsyncadd %s137, %s142
          %s144 = smul.addr %s29, 32
          %s145 = scalar_lea.hbm %s1, %s144
          %s147 = sshll.u32 %s140, 4
          %s148 = int_to_ptr.vmem [resolvable:$true] %s147
          %150 = dma.hbm_to_vmem [thread:$0]  %s145, 32, %s148, %s137
        $region20: #{tpu_custom_call.1} parent=15 // pred_fallthru
          _
        // Predicated region
        $region21: #{tpu_custom_call.1} parent=15 // pred_check
          %p151 = pneg %p80
        $region22: #{tpu_custom_call.1} parent=15 // pred_check_branch
          %153 = sbr.rel (%p151) target = $region24
        $region23: #{tpu_custom_call.1} parent=15 // pred_region
          %s154 = sand.u32 %s70, 1
          %s155 = scalar_lea.sflag [#allocation8], %s154
          %s156 = sand.u32 %s70, 1
          %s157 = smul.addr %s156, 8
          %s158 = scalar_lea.vmem [#allocation7], %s157
          %s160 = ssub.s32 128, 128
          %161 = vsyncadd %s155, %s160
          %s162 = smul.addr %s29, 128
          %s163 = scalar_lea.hbm %s2, %s162
          %s165 = sshll.u32 %s158, 4
          %s166 = int_to_ptr.vmem [resolvable:$true] %s165
          %168 = dma.hbm_to_vmem [thread:$0]  %s163, 128, %s166, %s155
        $region24: #{tpu_custom_call.1} parent=15 // pred_fallthru
          _
      $region16: #{tpu_custom_call.1} parent=5 // pred_fallthru
        _
      %p169 = scmp.le.s32.totalorder 1, %s22
      %p170 = scmp.lt.s32.totalorder %s22, 3
      %p171 = pnand %p169, %p170
      %p172 = pneg %p171
      // Predicated region
      $region25: #{tpu_custom_call.1} parent=5 // pred_check
        _
      $region26: #{tpu_custom_call.1} parent=5 // pred_check_branch
        %174 = sbr.rel (%p171) target = $region28
      $region27: #{tpu_custom_call.1} parent=5 // pred_region
        %s175 = ssub.s32 %s22, 1
        %s176 = sand.u32 %s47, 1
        %s177 = scalar_lea.sflag [#allocation5], %s176
        %s178 = sand.u32 %s47, 1
        %s179 = smul.addr %s178, 2
        %s180 = scalar_lea.vmem [#allocation4], %s179
        // Predicated region
        $region29: #{tpu_custom_call.1} parent=27 // pred_check
          %p181 = pneg %p60
        $region30: #{tpu_custom_call.1} parent=27 // pred_check_branch
          %183 = sbr.rel (%p181) target = $region32
        $region31: #{tpu_custom_call.1} parent=27 // pred_region
          %184 = dma.done %s177, 32
        $region32: #{tpu_custom_call.1} parent=27 // pred_fallthru
          _
        %s185 = sand.u32 %s73, 1
        %s186 = scalar_lea.sflag [#allocation8], %s185
        %s187 = sand.u32 %s73, 1
        %s188 = smul.addr %s187, 8
        %s189 = scalar_lea.vmem [#allocation7], %s188
        // Predicated region
        $region33: #{tpu_custom_call.1} parent=27 // pred_check
          %p190 = pneg %p86
        $region34: #{tpu_custom_call.1} parent=27 // pred_check_branch
          %192 = sbr.rel (%p190) target = $region36
        $region35: #{tpu_custom_call.1} parent=27 // pred_region
          %193 = dma.done %s186, 128
        $region36: #{tpu_custom_call.1} parent=27 // pred_fallthru
          _
        %s194 = sand.u32 %s47, 1
        %s195 = scalar_lea.sflag [#allocation5], %s194
        %s196 = sand.u32 %s47, 1
        %s197 = smul.addr %s196, 2
        %s198 = scalar_lea.vmem [#allocation4], %s197
        %p199 = pneg %p60
        %p200 = pneg %p57
        %s201 = sand.u32 %s73, 1
        %s202 = scalar_lea.sflag [#allocation8], %s201
        %s203 = sand.u32 %s73, 1
        %s204 = smul.addr %s203, 8
        %s205 = scalar_lea.vmem [#allocation7], %s204
        %p206 = pneg %p86
        %p207 = pneg %p83
        %p208 = pneg %p114
        %p209 = pneg %p111
        %s210 = sand.u32 %s101, 1
        %s211 = scalar_lea.sflag [#allocation6], %s210
        %s212 = sand.u32 %s101, 1
        %s213 = smul.addr %s212, 32
        %s214 = scalar_lea.vmem [#allocation9], %s213
        %s215 = smul.u32 4, %s32
        %s216 = smul.u32 %s32, 32
        %s217 = sld [smem:[#allocation3 + %s31]]
        %p218 = scmp.ge.s32.totalorder %s216, %s217
        // Predicated region
        $region37: #{tpu_custom_call.1} parent=27 // pred_check
          %p219 = pneg %p218
        $region38: #{tpu_custom_call.1} parent=27 // pred_check_branch
          %221 = sbr.rel (%p219) target = $region40
        $region39: #{tpu_custom_call.1} parent=27 // pred_region
          %222 = vst [vmem:[%s214] sm:$0xff] 0.0
          %223 = vst [vmem:[%s214 + $0x8] sm:$0xff] 0.0
          %224 = vst [vmem:[%s214 + $0x10] sm:$0xff] 0.0
          %225 = vst [vmem:[%s214 + $0x18] sm:$0xff] 0.0
        $region40: #{tpu_custom_call.1} parent=27 // pred_fallthru
          _
        %p226 = scmp.lt.s32.totalorder %s216, %s217
        // Predicated region
        $region41: #{tpu_custom_call.1} parent=27 // pred_check
          %p227 = pneg %p226
        $region42: #{tpu_custom_call.1} parent=27 // pred_check_branch
          %229 = sbr.rel (%p227) target = $region44
        $region43: #{tpu_custom_call.1} parent=27 // pred_region
          %v230 = vld [vmem:[%s180] sm:$0x1]
          %v231 = vld [vmem:[%s180 + $0x1] sm:$0x1]
          %v232 = vlaneseq
          %v233 = vshrl.u32 %v232, 7
          %v234 = vadd.s32 %v233, 8
          %v235 = vadd.s32 %v233, 16
          %v236 = vadd.s32 %v233, 24
          %v237 = vstv %s216
          %v238 = vadd.s32 %v237, %v233
          %v239 = vadd.s32 %v237, %v234
          %v240 = vadd.s32 %v237, %v235
          %v241 = vadd.s32 %v237, %v236
          %v242 = vlaneseq
          %v243 = vshrl.u32 %v242, 7
          %v244 = vsub.s32 0, %v243
          %v245 = vrot.slane %v230, %v244
          %vm246 = vcmp.ge.s32.totalorder %v238, %v245
          %vm247 = vcmp.ge.s32.totalorder %v239, %v245
          %vm248 = vcmp.ge.s32.totalorder %v240, %v245
          %vm249 = vcmp.ge.s32.totalorder %v241, %v245
          %v250 = vlaneseq
          %v251 = vshrl.u32 %v250, 7
          %v252 = vsub.s32 0, %v251
          %v253 = vrot.slane %v231, %v252
          %vm254 = vcmp.lt.s32.totalorder %v238, %v253
          %vm255 = vcmp.lt.s32.totalorder %v239, %v253
          %vm256 = vcmp.lt.s32.totalorder %v240, %v253
          %vm257 = vcmp.lt.s32.totalorder %v241, %v253
          %vm258 = vmand %vm246, %vm254
          %vm259 = vmand %vm247, %vm255
          %vm260 = vmand %vm248, %vm256
          %vm261 = vmand %vm249, %vm257
          %v262 = vsel %vm258, 1, 0
          %v263 = vsel %vm259, 1, 0
          %v264 = vsel %vm260, 1, 0
          %v265 = vsel %vm261, 1, 0
          %v266 = vcvt.s32.f32 %v262
          %v267 = vcvt.s32.f32 %v263
          %v268 = vcvt.s32.f32 %v264
          %v269 = vcvt.s32.f32 %v265
          %v270 = vld [vmem:[%s189] sm:$0xff]
          %vm271 = vcmask 64512
          %v273 = vsel %vm271, %v266, 0
          %v276 = vsel %vm271, %v267, 0
          %v279 = vsel %vm271, %v268, 0
          %v282 = vsel %vm271, %v269, 0
          %284 = vmatprep.subr.mxu0 0.0
          %285 = vmatpush1.msra.mxu0 %v270
          %286 = vmatprep.subr.mxu0 0.0
          %287 = vmatpush1.msra.mxu0 0.0
          %288 = vmatprep.subr.mxu0 0.0
          %289 = vmatpush1.msra.mxu0 0.0
          %290 = vmatprep.subr.mxu0 0.0
          %291 = vmatpush1.msra.mxu0 0.0
          %292 = vmatprep.subr.mxu0 0.0
          %293 = vmatpush1.msra.mxu0 0.0
          %294 = vmatprep.subr.mxu0 0.0
          %295 = vmatpush1.msra.mxu0 0.0
          %296 = vmatprep.subr.mxu0 0.0
          %297 = vmatpush1.msra.mxu0 0.0
          %298 = vmatprep.subr.mxu0 0.0
          %299 = vmatpush1.msra.mxu0 0.0
          %300 = vmatprep.subr.mxu0 0.0
          %301 = vmatpush1.msra.mxu0 0.0
          %302 = vmatprep.subr.mxu0 0.0
          %303 = vmatpush1.msra.mxu0 0.0
          %304 = vmatprep.subr.mxu0 0.0
          %305 = vmatpush1.msra.mxu0 0.0
          %306 = vmatprep.subr.mxu0 0.0
          %307 = vmatpush1.msra.mxu0 0.0
          %308 = vmatprep.subr.mxu0 0.0
          %309 = vmatpush1.msra.mxu0 0.0
          %310 = vmatprep.subr.mxu0 0.0
          %311 = vmatpush1.msra.mxu0 0.0
          %312 = vmatprep.subr.mxu0 0.0
          %313 = vmatpush1.msra.mxu0 0.0
          %314 = vmatprep.subr.mxu0 0.0
          %315 = vmatpush1.msra.mxu0 0.0
          %316 = vmatprep.subr.mxu0 0.0
          %317 = vmatpush1.msra.mxu0 0.0
          %318 = vmatprep.subr.mxu0 0.0
          %319 = vmatpush1.msra.mxu0 0.0
          %320 = vmatprep.subr.mxu0 0.0
          %321 = vmatpush1.msra.mxu0 0.0
          %322 = vmatprep.subr.mxu0 0.0
          %323 = vmatpush1.msra.mxu0 0.0
          %324 = vmatprep.subr.mxu0 0.0
          %325 = vmatpush1.msra.mxu0 0.0
          %326 = vmatprep.subr.mxu0 0.0
          %327 = vmatpush1.msra.mxu0 0.0
          %328 = vmatprep.subr.mxu0 0.0
          %329 = vmatpush1.msra.mxu0 0.0
          %330 = vmatprep.subr.mxu0 0.0
          %331 = vmatpush1.msra.mxu0 0.0
          %332 = vmatprep.subr.mxu0 0.0
          %333 = vmatpush1.msra.mxu0 0.0
          %334 = vmatprep.subr.mxu0 0.0
          %335 = vmatpush1.msra.mxu0 0.0
          %336 = vmatprep.subr.mxu0 0.0
          %337 = vmatpush1.msra.mxu0 0.0
          %338 = vmatprep.subr.mxu0 0.0
          %339 = vmatpush1.msra.mxu0 0.0
          %340 = vmatprep.subr.mxu0 0.0
          %341 = vmatpush1.msra.mxu0 0.0
          %342 = vmatprep.subr.mxu0 0.0
          %343 = vmatpush1.msra.mxu0 0.0
          %344 = vmatprep.subr.mxu0 0.0
          %345 = vmatpush1.msra.mxu0 0.0
          %346 = vmatprep.subr.mxu0 0.0
          %347 = vmatpush1.msra.mxu0 0.0
          %348 = vmatprep.mubr.f32.mxu0 0.0
          %349 = vmatmul.mubr.f32.gmra.mrb[0].mxu0 %v273
          %v350 = vpop.f32.mrb[0].mxu0
          %v351 = vadd.f32 0.0, %v350
          %v352 = vpop.f32.mrb[0].mxu0
          %353 = vmatprep.mubr.f32.mxu0 0.0
          %354 = vmatmul.mubr.f32.gmra.mrb[0].mxu0 %v276
          %v355 = vpop.f32.mrb[0].mxu0
          %v356 = vadd.f32 0.0, %v355
          %v357 = vpop.f32.mrb[0].mxu0
          %358 = vmatprep.mubr.f32.mxu0 0.0
          %359 = vmatmul.mubr.f32.gmra.mrb[0].mxu0 %v279
          %v360 = vpop.f32.mrb[0].mxu0
          %v361 = vadd.f32 0.0, %v360
          %v362 = vpop.f32.mrb[0].mxu0
          %363 = vmatprep.mubr.f32.mxu0 0.0
          %364 = vmatmul.mubr.f32.gmra.mrb[0].mxu0 %v282
          %v365 = vpop.f32.mrb[0].mxu0
          %v366 = vadd.f32 0.0, %v365
          %v367 = vpop.f32.mrb[0].mxu0
          %368 = vdwg.mxu0
          %369 = vst [vmem:[%s214] sm:$0xff] %v351
          %370 = vst [vmem:[%s214 + $0x8] sm:$0xff] %v356
          %371 = vst [vmem:[%s214 + $0x10] sm:$0xff] %v361
          %372 = vst [vmem:[%s214 + $0x18] sm:$0xff] %v366
        $region44: #{tpu_custom_call.1} parent=27 // pred_fallthru
          _
        %s373 = sand.u32 %s101, 1
        %s374 = scalar_lea.sflag [#allocation6], %s373
        %s375 = sand.u32 %s101, 1
        %s376 = smul.addr %s375, 32
        %s377 = scalar_lea.vmem [#allocation9], %s376
        // Predicated region
        $region45: #{tpu_custom_call.1} parent=27 // pred_check
          %p378 = pneg %p111
        $region46: #{tpu_custom_call.1} parent=27 // pred_check_branch
          %380 = sbr.rel (%p378) target = $region48
        $region47: #{tpu_custom_call.1} parent=27 // pred_region
          %s381 = smul.u32 4, %s32
          %s383 = ssub.s32 512, 512
          %384 = vsyncadd %s374, %s383
          %s385 = smul.addr %s31, 4
          %s386 = sadd.s32 %s381, %s385
          %s387 = smul.addr %s386, 128
          %s388 = scalar_lea.hbm %s3, %s387
          %s389 = sshll.u32 %s377, 4
          %s390 = int_to_ptr.vmem [resolvable:$true] %s389
          %395 = dma.vmem_to_hbm [thread:$0]  %s390, 512, %s388, %s374, 128, 128, 8
        $region48: #{tpu_custom_call.1} parent=27 // pred_fallthru
          _
      $region28: #{tpu_custom_call.1} parent=5 // pred_fallthru
        _
      %p396 = scmp.le.s32.totalorder 2, %s22
      // Predicated region
      $region49: #{tpu_custom_call.1} parent=5 // pred_check
        %p397 = pneg %p396
      $region50: #{tpu_custom_call.1} parent=5 // pred_check_branch
        %399 = sbr.rel (%p397) target = $region52
      $region51: #{tpu_custom_call.1} parent=5 // pred_region
        %s400 = ssub.s32 %s22, 2
        // Predicated region
        $region53: #{tpu_custom_call.1} parent=51 // pred_check
          %p401 = pneg %p117
        $region54: #{tpu_custom_call.1} parent=51 // pred_check_branch
          %403 = sbr.rel (%p401) target = $region56
        $region55: #{tpu_custom_call.1} parent=51 // pred_region
          %s404 = sand.u32 %s102, 1
          %s405 = scalar_lea.sflag [#allocation6], %s404
          %s406 = sand.u32 %s102, 1
          %s407 = smul.addr %s406, 32
          %s408 = scalar_lea.vmem [#allocation9], %s407
          %409 = dma.done %s405, 512
        $region56: #{tpu_custom_call.1} parent=51 // pred_fallthru
          _
      $region52: #{tpu_custom_call.1} parent=5 // pred_fallthru
        _
    $region6: #{tpu_custom_call.1} parent=1 // loop_footer
      %s26 = sadd.s32 1, %s22
    $region7: #{tpu_custom_call.1} parent=1 // loop_footer_branch
      %21 = sbr.rel target = $region3
    $region8: #{tpu_custom_call.1} parent=1 // loop_exit
      _
    %410 = vsyncpa [#allocation5], 1
    %s411 = scalar_lea.sflag [#allocation5], 1
    %412 = vsyncpa %s411, 1
    %413 = vsyncpa [#allocation8], 1
    %s414 = scalar_lea.sflag [#allocation8], 1
    %415 = vsyncpa %s414, 1
    %416 = vsyncpa [#allocation6], 1
    %s417 = scalar_lea.sflag [#allocation6], 1
    %418 = vsyncpa %s417, 1

</llo_original>
